<compile_context>
chip_gen: v6e
topology: v6e:2x2x1
jax: 0.10.0
libtpu: 0.0.40
codegen_flags: <defaults>
</compile_context>

<pallas_src>
import jax
import jax.numpy as jnp
from jax.experimental import pallas as pl
from jax.experimental.pallas import tpu as pltpu


def _critic_kernel(x_ref, w1_ref, b1_ref, w2_ref, b2_ref, wv_ref, bv_ref, o_ref):
    # x_ref: (D, TB) f32     w1_ref: (H, D) bf16   b1_ref: (H, 1) f32
    # w2_ref: (H, H) bf16    b2_ref: (H, 1) f32
    # wv_ref: (H, 1) f32     bv_ref: (1, 1) f32 in SMEM
    # o_ref:  (1, TB) f32  (lane-dense value row for this batch tile)
    x_bf16 = x_ref[...].astype(jnp.bfloat16)

    # Layer 1: Linear + Tanh (bf16 MXU inputs, f32 accumulate, f32 tanh/bias)
    h1 = jnp.tanh(
        jnp.dot(w1_ref[...], x_bf16, preferred_element_type=jnp.float32)
        + b1_ref[...]
    )  # (H, TB) f32

    # Layer 2: Linear + Tanh
    h2 = jnp.tanh(
        jnp.dot(w2_ref[...], h1.astype(jnp.bfloat16),
                preferred_element_type=jnp.float32)
        + b2_ref[...]
    )  # (H, TB) f32

    # Value head: nn.Linear(H, 1) as VPU multiply + sublane (XLU) reduction
    # (avoids an N=1 MXU matmul; result is already lane-dense).
    v = jnp.sum(h2 * wv_ref[...], axis=0, keepdims=True) + bv_ref[0, 0]  # (1, TB)
    o_ref[...] = v


def critic_forward(x, params, *, tb=512):
    """Fused critic MLP. x: [B, D_obs] (any float/int dtype). Returns [B, 1] f32."""
    w1, b1, w2, b2, wv, bv = params
    x = x.astype(jnp.float32)                     # type_safe(): .float()
    B, D = x.shape
    H = w1.shape[0]

    # Adaptive, lane-full batch tile (multiple of 128); pad batch only if needed.
    tb = max(128, min(tb, pl.cdiv(B, 128) * 128))
    b_pad = pl.cdiv(B, tb) * tb
    if b_pad != B:
        x = jnp.pad(x, ((0, b_pad - B), (0, 0)))
    # Lay the batch on lanes (lane-dense compute + unmasked stores).
    x_t = x.T                                     # (D, b_pad); fuses with pad in XLA
    grid = (b_pad // tb,)

    flops = int(2 * b_pad * (D * H + H * H + H))
    transcendentals = int(2 * b_pad * H)
    bytes_accessed = int(
        b_pad * D * 4 + w1.size * 2 + w2.size * 2
        + (b1.size + b2.size + wv.size + bv.size) * 4
        + b_pad * 4
    )

    out = pl.pallas_call(
        _critic_kernel,
        out_shape=jax.ShapeDtypeStruct((1, b_pad), jnp.float32),
        grid=grid,
        in_specs=[
            pl.BlockSpec((D, tb), lambda i: (0, i)),   # x tile: streamed per step
            pl.BlockSpec((H, D), lambda i: (0, 0)),    # w1: resident
            pl.BlockSpec((H, 1), lambda i: (0, 0)),    # b1: resident
            pl.BlockSpec((H, H), lambda i: (0, 0)),    # w2: resident
            pl.BlockSpec((H, 1), lambda i: (0, 0)),    # b2: resident
            pl.BlockSpec((H, 1), lambda i: (0, 0)),    # wv: resident
            pl.BlockSpec(memory_space=pltpu.MemorySpace.SMEM),  # bv scalar
        ],
        out_specs=pl.BlockSpec((1, tb), lambda i: (0, i)),
        compiler_params=pltpu.CompilerParams(
            dimension_semantics=("parallel",),
            vmem_limit_bytes=16 * 1024 * 1024,
        ),
        cost_estimate=pl.CostEstimate(
            flops=flops,
            transcendentals=transcendentals,
            bytes_accessed=bytes_accessed,
        ),
    )(x_t, w1, b1, w2, b2, wv, bv)

    return out[0, :B][:, None]                    # (B, 1)


def init_params(key, obs_dim, hidden):
    """Deterministic synthetic params, PyTorch nn.Linear layout (out, in)."""
    k1, k2, k3, k4, k5, k6 = jax.random.split(key, 6)
    w1 = (jax.random.normal(k1, (hidden, obs_dim), jnp.float32) * 0.1).astype(jnp.bfloat16)
    b1 = jax.random.normal(k2, (hidden, 1), jnp.float32) * 0.01
    w2 = (jax.random.normal(k3, (hidden, hidden), jnp.float32) * 0.1).astype(jnp.bfloat16)
    b2 = jax.random.normal(k4, (hidden, 1), jnp.float32) * 0.01
    wv = jax.random.normal(k5, (hidden, 1), jnp.float32) * 0.1
    bv = jax.random.normal(k6, (1, 1), jnp.float32) * 0.01
    return (w1, b1, w2, b2, wv, bv)


def critic_reference(x, params):
    """Pure-JAX (row-major, f32-math) reference for a correctness check."""
    w1, b1, w2, b2, wv, bv = params
    x = x.astype(jnp.float32)
    h1 = jnp.tanh(x @ w1.astype(jnp.float32).T + b1.T)
    h2 = jnp.tanh(h1 @ w2.astype(jnp.float32).T + b2.T)
    return h2 @ wv + bv


if __name__ == "__main__":
    # Small shapes: batch=8, flat obs dim=16 ('history' critic input), hidden=128
    # (hidden chosen as a multiple of 128 so MXU / vreg lanes are fully used).
    B, OBS_DIM, HIDDEN = 8, 16, 128

    key = jax.random.PRNGKey(0)
    kx, kp = jax.random.split(key)
    x = jax.random.normal(kx, (B, OBS_DIM), jnp.float32)
    params = init_params(kp, OBS_DIM, HIDDEN)

    v = critic_forward(x, params)
    v = jax.block_until_ready(v)

    v_ref = critic_reference(x, params)
    assert v.shape == (B, 1)
    # bf16 MXU inputs => small expected drift vs the f32 reference.
    assert jnp.allclose(v, v_ref, atol=2e-2, rtol=2e-2), "mismatch vs reference"

    # TODO(synk): DuelingHead / Q-function value-head branches (get_is_dueling /
    # get_is_q_func) and the recurrent SimpleLSTM feature path are config-dependent
    # and not exercised here; the default Linear->Tanh MLP + Linear(H,1) head is
    # implemented.
    print("KERNEL_OK")
</pallas_src>

<mosaic_0001>
module attributes {stable_mosaic.version = 11 : i64} {
  func.func @_critic_kernel(%arg0: i32, %arg1: memref<16x128xf32, #tpu.memory_space<vmem>>, %arg2: memref<128x16xbf16, #tpu.memory_space<vmem>>, %arg3: memref<128x1xf32, #tpu.memory_space<vmem>>, %arg4: memref<128x128xbf16, #tpu.memory_space<vmem>>, %arg5: memref<128x1xf32, #tpu.memory_space<vmem>>, %arg6: memref<128x1xf32, #tpu.memory_space<vmem>>, %arg7: memref<1x1xf32, #tpu.memory_space<smem>>, %arg8: memref<1x128xf32, #tpu.memory_space<vmem>>) attributes {dimension_semantics = [#tpu.dimension_semantics<parallel>], iteration_bounds = array<i64: 1>, scalar_prefetch = 0 : i64, scratch_operands = 0 : i64, tpu.core_type = #tpu.core_type<tc>, window_params = [{transform_indices = @transform_0, window_bounds = array<i64: 16, 128>}, {pipeline_mode = #tpu.pipeline_mode<synchronous>, transform_indices = @transform_1, window_bounds = array<i64: 128, 16>}, {pipeline_mode = #tpu.pipeline_mode<synchronous>, transform_indices = @transform_2, window_bounds = array<i64: 128, 1>}, {pipeline_mode = #tpu.pipeline_mode<synchronous>, transform_indices = @transform_3, window_bounds = array<i64: 128, 128>}, {pipeline_mode = #tpu.pipeline_mode<synchronous>, transform_indices = @transform_4, window_bounds = array<i64: 128, 1>}, {pipeline_mode = #tpu.pipeline_mode<synchronous>, transform_indices = @transform_5, window_bounds = array<i64: 128, 1>}, {transform_indices = @transform_6, window_bounds = array<i64: 1, 1>}, {transform_indices = @transform_7, window_bounds = array<i64: 1, 128>}]} {
    %c0 = arith.constant 0 : index
    %c0_0 = arith.constant 0 : index
    %0 = vector.load %arg1[%c0, %c0_0] : memref<16x128xf32, #tpu.memory_space<vmem>>, vector<16x128xf32>
    %1 = arith.truncf %0 : vector<16x128xf32> to vector<16x128xbf16>
    %c0_1 = arith.constant 0 : index
    %c0_2 = arith.constant 0 : index
    %2 = vector.load %arg2[%c0_1, %c0_2] : memref<128x16xbf16, #tpu.memory_space<vmem>>, vector<128x16xbf16>
    %cst = arith.constant dense<0.000000e+00> : vector<128x128xf32>
    %3 = tpu.matmul %2, %1, %cst {dimension_numbers = #tpu.dot_dimension_numbers<[1], [0], [0], [1], [0, 0, 1, 1], [], []>} : vector<128x16xbf16>, vector<16x128xbf16>, vector<128x128xf32> -> vector<128x128xf32>
    %c0_3 = arith.constant 0 : index
    %c0_4 = arith.constant 0 : index
    %4 = vector.load %arg3[%c0_3, %c0_4] : memref<128x1xf32, #tpu.memory_space<vmem>>, vector<128x1xf32>
    %5 = vector.broadcast %4 : vector<128x1xf32> to vector<128x128xf32>
    %6 = arith.addf %3, %5 : vector<128x128xf32>
    %7 = math.tanh %6 : vector<128x128xf32>
    %c0_5 = arith.constant 0 : index
    %c0_6 = arith.constant 0 : index
    %8 = vector.load %arg4[%c0_5, %c0_6] : memref<128x128xbf16, #tpu.memory_space<vmem>>, vector<128x128xbf16>
    %9 = arith.truncf %7 : vector<128x128xf32> to vector<128x128xbf16>
    %cst_7 = arith.constant dense<0.000000e+00> : vector<128x128xf32>
    %10 = tpu.matmul %8, %9, %cst_7 {dimension_numbers = #tpu.dot_dimension_numbers<[1], [0], [0], [1], [0, 0, 1, 1], [], []>} : vector<128x128xbf16>, vector<128x128xbf16>, vector<128x128xf32> -> vector<128x128xf32>
    %c0_8 = arith.constant 0 : index
    %c0_9 = arith.constant 0 : index
    %11 = vector.load %arg5[%c0_8, %c0_9] : memref<128x1xf32, #tpu.memory_space<vmem>>, vector<128x1xf32>
    %12 = vector.broadcast %11 : vector<128x1xf32> to vector<128x128xf32>
    %13 = arith.addf %10, %12 : vector<128x128xf32>
    %14 = math.tanh %13 : vector<128x128xf32>
    %c0_10 = arith.constant 0 : index
    %c0_11 = arith.constant 0 : index
    %15 = vector.load %arg6[%c0_10, %c0_11] : memref<128x1xf32, #tpu.memory_space<vmem>>, vector<128x1xf32>
    %16 = vector.broadcast %15 : vector<128x1xf32> to vector<128x128xf32>
    %17 = arith.mulf %14, %16 : vector<128x128xf32>
    %cst_12 = arith.constant dense<0.000000e+00> : vector<128xf32>
    %18 = vector.multi_reduction <add>, %17, %cst_12 [0] : vector<128x128xf32> to vector<128xf32>
    %19 = vector.shape_cast %18 : vector<128xf32> to vector<1x128xf32>
    %c0_13 = arith.constant 0 : index
    %c0_14 = arith.constant 0 : index
    %20 = memref.load %arg7[%c0_13, %c0_14] : memref<1x1xf32, #tpu.memory_space<smem>>
    %21 = vector.broadcast %20 : f32 to vector<1x128xf32>
    %22 = arith.addf %19, %21 : vector<1x128xf32>
    %c0_15 = arith.constant 0 : index
    %c0_16 = arith.constant 0 : index
    %23 = vector.load %arg8[%c0_15, %c0_16] : memref<1x128xf32, #tpu.memory_space<vmem>>, vector<1x128xf32>
    tpu.vector_store %arg8[%c0_15, %c0_16], %22 {strides = array<i32>} : memref<1x128xf32, #tpu.memory_space<vmem>>, vector<1x128xf32>,
    return
  }
  func.func @transform_0(%arg0: i32) -> (i32, i32) {
    %c0_i32 = arith.constant 0 : i32
    %c0_i32_0 = arith.constant 0 : i32
    return %c0_i32, %arg0 : i32, i32
  }
  func.func @transform_1(%arg0: i32) -> (i32, i32) {
    %c0_i32 = arith.constant 0 : i32
    %c0_i32_0 = arith.constant 0 : i32
    %c0_i32_1 = arith.constant 0 : i32
    return %c0_i32, %c0_i32_0 : i32, i32
  }
  func.func @transform_2(%arg0: i32) -> (i32, i32) {
    %c0_i32 = arith.constant 0 : i32
    %c0_i32_0 = arith.constant 0 : i32
    %c0_i32_1 = arith.constant 0 : i32
    return %c0_i32, %c0_i32_0 : i32, i32
  }
  func.func @transform_3(%arg0: i32) -> (i32, i32) {
    %c0_i32 = arith.constant 0 : i32
    %c0_i32_0 = arith.constant 0 : i32
    %c0_i32_1 = arith.constant 0 : i32
    return %c0_i32, %c0_i32_0 : i32, i32
  }
  func.func @transform_4(%arg0: i32) -> (i32, i32) {
    %c0_i32 = arith.constant 0 : i32
    %c0_i32_0 = arith.constant 0 : i32
    %c0_i32_1 = arith.constant 0 : i32
    return %c0_i32, %c0_i32_0 : i32, i32
  }
  func.func @transform_5(%arg0: i32) -> (i32, i32) {
    %c0_i32 = arith.constant 0 : i32
    %c0_i32_0 = arith.constant 0 : i32
    %c0_i32_1 = arith.constant 0 : i32
    return %c0_i32, %c0_i32_0 : i32, i32
  }
  func.func @transform_6(%arg0: i32) -> (i32, i32) {
    %c0_i32 = arith.constant 0 : i32
    %c0_i32_0 = arith.constant 0 : i32
    %c0_i32_1 = arith.constant 0 : i32
    return %c0_i32, %c0_i32_0 : i32, i32
  }
  func.func @transform_7(%arg0: i32) -> (i32, i32) {
    %c0_i32 = arith.constant 0 : i32
    %c0_i32_0 = arith.constant 0 : i32
    return %c0_i32, %arg0 : i32, i32
  }
}

</mosaic_0001>

<llo_original>
// kernel: tpu_custom_call.1
$region0: #{tpu_custom_call.1}
  #allocation0 [shape = 'u32[]', space=smem, size = 0x4, offset = 0x4, fixed_abs, tag = 'smem constant byte address 0x4 - core index']
  #allocation1 [shape = 'u32[144,128]{1,0:T(1,128)}', space=vmem, size = 0x12000, scoped, tag = 'internal scratch']
  #allocation2 [shape = 'f32[1,1]{1,0:T(1,128)S(6)}', space=smem, size = 0x200, scoped, tag = 'scoped memory for tpu_custom_call.1']
  %s0 = inlined_call_operand.vmem [shape: f32[16,128], index: 0, kind: input, shape index: {}]
  %s1 = inlined_call_operand.vmem [shape: bf16[128,16], index: 1, kind: input, shape index: {}]
  %s2 = inlined_call_operand.vmem [shape: f32[128,1], index: 2, kind: input, shape index: {}]
  %s3 = inlined_call_operand.vmem [shape: bf16[128,128], index: 3, kind: input, shape index: {}]
  %s4 = inlined_call_operand.vmem [shape: f32[128,1], index: 4, kind: input, shape index: {}]
  %s5 = inlined_call_operand.vmem [shape: f32[128,1], index: 5, kind: input, shape index: {}]
  %s6 = inlined_call_operand.<no memory space> [shape: f32[1,1], index: 6, kind: input, shape index: {}]
  %s7 = inlined_call_operand.hbm [shape: f32[1,128], index: 7, kind: output, shape index: {}]
  %s8 = sld [smem:[#allocation0]]
  $region38: #{tpu_custom_call.1} parent=0
    _
  %s10 = ssub.s32 1, %s8
  %s11 = scalar_select 0, %s10, %s8
  %12 = sst [smem:[#allocation2]] %s6
  $region1: #{tpu_custom_call.1} parent=0
    #allocation3 [shape = 'u8[512]{0}', space=vmem, size = 0x400, scoped, tag = 'output window, operand 0, single buffered']
    #allocation4 [shape = 's32[1]{0}', space=sflag, size = 0x4, scoped, tag = 'scoped memory for tpu_custom_call.1']
    %13 = vsyncpa [#allocation4], 0
    // Predicated region
    $region2: #{tpu_custom_call.1} parent=1 // pred_check
      _
    $region3: #{tpu_custom_call.1} parent=1 // pred_check_branch
      %15 = sbr.rel (0) target = $region5
    $region4: #{tpu_custom_call.1} parent=1 // pred_region
      _
    $region5: #{tpu_custom_call.1} parent=1 // pred_fallthru
      _
    // Predicated region
    $region6: #{tpu_custom_call.1} parent=1 // pred_check
      _
    $region7: #{tpu_custom_call.1} parent=1 // pred_check_branch
      %17 = sbr.rel (0) target = $region9
    $region8: #{tpu_custom_call.1} parent=1 // pred_region
      _
    $region9: #{tpu_custom_call.1} parent=1 // pred_fallthru
      _
    // Predicated region
    $region10: #{tpu_custom_call.1} parent=1 // pred_check
      _
    $region11: #{tpu_custom_call.1} parent=1 // pred_check_branch
      %19 = sbr.rel (0) target = $region13
    $region12: #{tpu_custom_call.1} parent=1 // pred_region
      _
    $region13: #{tpu_custom_call.1} parent=1 // pred_fallthru
      _
    // Predicated region
    $region14: #{tpu_custom_call.1} parent=1 // pred_check
      _
    $region15: #{tpu_custom_call.1} parent=1 // pred_check_branch
      %21 = sbr.rel (0) target = $region17
    $region16: #{tpu_custom_call.1} parent=1 // pred_region
      _
    $region17: #{tpu_custom_call.1} parent=1 // pred_fallthru
      _
    // Predicated region
    $region18: #{tpu_custom_call.1} parent=1 // pred_check
      _
    $region19: #{tpu_custom_call.1} parent=1 // pred_check_branch
      %23 = sbr.rel (0) target = $region21
    $region20: #{tpu_custom_call.1} parent=1 // pred_region
      _
    $region21: #{tpu_custom_call.1} parent=1 // pred_fallthru
      _
    // Predicated region
    $region22: #{tpu_custom_call.1} parent=1 // pred_check
      _
    $region23: #{tpu_custom_call.1} parent=1 // pred_check_branch
      %25 = sbr.rel (0) target = $region25
    $region24: #{tpu_custom_call.1} parent=1 // pred_region
      _
    $region25: #{tpu_custom_call.1} parent=1 // pred_fallthru
      _
    // Predicated region
    $region26: #{tpu_custom_call.1} parent=1 // pred_check
      _
    $region27: #{tpu_custom_call.1} parent=1 // pred_check_branch
      %27 = sbr.rel (0) target = $region29
    $region28: #{tpu_custom_call.1} parent=1 // pred_region
      _
    $region29: #{tpu_custom_call.1} parent=1 // pred_fallthru
      _
    %v29 = vld [vmem:[%s0] sm:$0xff]
    %v30 = vld [vmem:[%s0 + $0x8] sm:$0xff]
    %v31 = vpack.c.bf16 %v30, %v29
    %v32 = vld [vmem:[%s1] sm:$0xf]
    %v33 = vld [vmem:[%s1 + $0x4] sm:$0xf]
    %v34 = vld [vmem:[%s1 + $0x8] sm:$0xf]
    %v35 = vld [vmem:[%s1 + $0xc] sm:$0xf]
    %v36 = vld [vmem:[%s1 + $0x10] sm:$0xf]
    %v37 = vld [vmem:[%s1 + $0x14] sm:$0xf]
    %v38 = vld [vmem:[%s1 + $0x18] sm:$0xf]
    %v39 = vld [vmem:[%s1 + $0x1c] sm:$0xf]
    %v40 = vld [vmem:[%s1 + $0x20] sm:$0xf]
    %v41 = vld [vmem:[%s1 + $0x24] sm:$0xf]
    %v42 = vld [vmem:[%s1 + $0x28] sm:$0xf]
    %v43 = vld [vmem:[%s1 + $0x2c] sm:$0xf]
    %v44 = vld [vmem:[%s1 + $0x30] sm:$0xf]
    %v45 = vld [vmem:[%s1 + $0x34] sm:$0xf]
    %v46 = vld [vmem:[%s1 + $0x38] sm:$0xf]
    %v47 = vld [vmem:[%s1 + $0x3c] sm:$0xf]
    %v48 = vld [vmem:[%s2] sm:$0xff]
    %v49 = vld [vmem:[%s2 + $0x8] sm:$0xff]
    %v50 = vld [vmem:[%s2 + $0x10] sm:$0xff]
    %v51 = vld [vmem:[%s2 + $0x18] sm:$0xff]
    %v52 = vld [vmem:[%s2 + $0x20] sm:$0xff]
    %v53 = vld [vmem:[%s2 + $0x28] sm:$0xff]
    %v54 = vld [vmem:[%s2 + $0x30] sm:$0xff]
    %v55 = vld [vmem:[%s2 + $0x38] sm:$0xff]
    %v56 = vld [vmem:[%s2 + $0x40] sm:$0xff]
    %v57 = vld [vmem:[%s2 + $0x48] sm:$0xff]
    %v58 = vld [vmem:[%s2 + $0x50] sm:$0xff]
    %v59 = vld [vmem:[%s2 + $0x58] sm:$0xff]
    %v60 = vld [vmem:[%s2 + $0x60] sm:$0xff]
    %v61 = vld [vmem:[%s2 + $0x68] sm:$0xff]
    %v62 = vld [vmem:[%s2 + $0x70] sm:$0xff]
    %v63 = vld [vmem:[%s2 + $0x78] sm:$0xff]
    %65 = vset.pattern.permute.xlu0 0
    %66 = vperm.xlu0 %65, %v48
    %v67 = vpop.permute.xlu0 %66
    %70 = vset.pattern.permute.xlu0 0
    %71 = vperm.xlu0 %70, %v49
    %v72 = vpop.permute.xlu0 %71
    %75 = vset.pattern.permute.xlu0 0
    %76 = vperm.xlu0 %75, %v50
    %v77 = vpop.permute.xlu0 %76
    %80 = vset.pattern.permute.xlu0 0
    %81 = vperm.xlu0 %80, %v51
    %v82 = vpop.permute.xlu0 %81
    %85 = vset.pattern.permute.xlu0 0
    %86 = vperm.xlu0 %85, %v52
    %v87 = vpop.permute.xlu0 %86
    %90 = vset.pattern.permute.xlu0 0
    %91 = vperm.xlu0 %90, %v53
    %v92 = vpop.permute.xlu0 %91
    %95 = vset.pattern.permute.xlu0 0
    %96 = vperm.xlu0 %95, %v54
    %v97 = vpop.permute.xlu0 %96
    %100 = vset.pattern.permute.xlu0 0
    %101 = vperm.xlu0 %100, %v55
    %v102 = vpop.permute.xlu0 %101
    %105 = vset.pattern.permute.xlu0 0
    %106 = vperm.xlu0 %105, %v56
    %v107 = vpop.permute.xlu0 %106
    %110 = vset.pattern.permute.xlu0 0
    %111 = vperm.xlu0 %110, %v57
    %v112 = vpop.permute.xlu0 %111
    %115 = vset.pattern.permute.xlu0 0
    %116 = vperm.xlu0 %115, %v58
    %v117 = vpop.permute.xlu0 %116
    %120 = vset.pattern.permute.xlu0 0
    %121 = vperm.xlu0 %120, %v59
    %v122 = vpop.permute.xlu0 %121
    %125 = vset.pattern.permute.xlu0 0
    %126 = vperm.xlu0 %125, %v60
    %v127 = vpop.permute.xlu0 %126
    %130 = vset.pattern.permute.xlu0 0
    %131 = vperm.xlu0 %130, %v61
    %v132 = vpop.permute.xlu0 %131
    %135 = vset.pattern.permute.xlu0 0
    %136 = vperm.xlu0 %135, %v62
    %v137 = vpop.permute.xlu0 %136
    %140 = vset.pattern.permute.xlu0 0
    %141 = vperm.xlu0 %140, %v63
    %v142 = vpop.permute.xlu0 %141
    %v160 = vunpack.c.l.b16 %v32
    %v161 = vunpack.c.l.b16 %v33
    %v162 = vunpack.c.l.b16 %v34
    %v163 = vunpack.c.l.b16 %v35
    %v164 = vunpack.c.l.b16 %v36
    %v165 = vunpack.c.l.b16 %v37
    %v166 = vunpack.c.l.b16 %v38
    %v167 = vunpack.c.l.b16 %v39
    %v168 = vunpack.c.l.b16 %v40
    %v169 = vunpack.c.l.b16 %v41
    %v170 = vunpack.c.l.b16 %v42
    %v171 = vunpack.c.l.b16 %v43
    %v172 = vunpack.c.l.b16 %v44
    %v173 = vunpack.c.l.b16 %v45
    %v174 = vunpack.c.l.b16 %v46
    %v175 = vunpack.c.l.b16 %v47
    %v176 = vpack.c.b16 %v161, %v160
    %v177 = vpack.c.b16 %v163, %v162
    %v178 = vpack.c.b16 %v165, %v164
    %v179 = vpack.c.b16 %v167, %v166
    %v180 = vpack.c.b16 %v169, %v168
    %v181 = vpack.c.b16 %v171, %v170
    %v182 = vpack.c.b16 %v173, %v172
    %v183 = vpack.c.b16 %v175, %v174
    %vm184 = vcmask 130048
    %v186 = vsel %vm184, %v176, 0
    %v189 = vsel %vm184, %v177, 0
    %v192 = vsel %vm184, %v178, 0
    %v195 = vsel %vm184, %v179, 0
    %v198 = vsel %vm184, %v180, 0
    %v201 = vsel %vm184, %v181, 0
    %v204 = vsel %vm184, %v182, 0
    %v207 = vsel %vm184, %v183, 0
    %209 = vmatprep.subr.bf16.mxu0 0
    %210 = vmatpush1.bf16.msra.mxu0 0
    %211 = vmatprep.subr.bf16.mxu0 0
    %212 = vmatpush1.bf16.msra.mxu0 0
    %213 = vmatprep.subr.bf16.mxu0 0
    %214 = vmatpush1.bf16.msra.mxu0 0
    %215 = vmatprep.subr.bf16.mxu0 0
    %216 = vmatpush1.bf16.msra.mxu0 0
    %217 = vmatprep.subr.bf16.mxu0 0
    %218 = vmatpush1.bf16.msra.mxu0 0
    %219 = vmatprep.subr.bf16.mxu0 0
    %220 = vmatpush1.bf16.msra.mxu0 0
    %221 = vmatprep.subr.bf16.mxu0 0
    %222 = vmatpush1.bf16.msra.mxu0 0
    %223 = vmatprep.subr.bf16.mxu0 0
    %224 = vmatpush1.bf16.msra.mxu0 %v31
    %225 = vmatprep.subr.bf16.mxu0 0
    %226 = vmatpush2.bf16.msra.mxu0 0
    %227 = vmatprep.subr.bf16.mxu0 0
    %228 = vmatpush2.bf16.msra.mxu0 0
    %229 = vmatprep.subr.bf16.mxu0 0
    %230 = vmatpush2.bf16.msra.mxu0 0
    %231 = vmatprep.subr.bf16.mxu0 0
    %232 = vmatpush2.bf16.msra.mxu0 0
    %233 = vmatprep.subr.bf16.mxu0 0
    %234 = vmatpush2.bf16.msra.mxu0 0
    %235 = vmatprep.subr.bf16.mxu0 0
    %236 = vmatpush2.bf16.msra.mxu0 0
    %237 = vmatprep.subr.bf16.mxu0 0
    %238 = vmatpush2.bf16.msra.mxu0 0
    %239 = vmatprep.subr.bf16.mxu0 0
    %240 = vmatpush2.bf16.msra.mxu0 0
    %241 = vmatprep.mubr.bf16.mxu0 0
    %242 = vmatmul.mubr.bf16.gmra.mxu0 %v186
    %v243 = vpop.f32.mrf.mxu0
    %v244 = vadd.f32 %v67, %v243
    %v245 = vpop.f32.mrf.mxu0
    %v246 = vpop.f32.mrf.mxu0
    %v247 = vadd.f32 %v72, %v246
    %v248 = vpop.f32.mrf.mxu0
    %249 = vmatprep.mubr.bf16.mxu0 0
    %250 = vmatmul.mubr.bf16.gmra.mxu0 %v189
    %v251 = vpop.f32.mrf.mxu0
    %v252 = vadd.f32 %v77, %v251
    %v253 = vpop.f32.mrf.mxu0
    %v254 = vpop.f32.mrf.mxu0
    %v255 = vadd.f32 %v82, %v254
    %v256 = vpop.f32.mrf.mxu0
    %257 = vmatprep.mubr.bf16.mxu0 0
    %258 = vmatmul.mubr.bf16.gmra.mxu0 %v192
    %v259 = vpop.f32.mrf.mxu0
    %v260 = vadd.f32 %v87, %v259
    %v261 = vpop.f32.mrf.mxu0
    %v262 = vpop.f32.mrf.mxu0
    %v263 = vadd.f32 %v92, %v262
    %v264 = vpop.f32.mrf.mxu0
    %265 = vmatprep.mubr.bf16.mxu0 0
    %266 = vmatmul.mubr.bf16.gmra.mxu0 %v195
    %v267 = vpop.f32.mrf.mxu0
    %v268 = vadd.f32 %v97, %v267
    %v269 = vpop.f32.mrf.mxu0
    %v270 = vpop.f32.mrf.mxu0
    %v271 = vadd.f32 %v102, %v270
    %v272 = vpop.f32.mrf.mxu0
    %273 = vmatprep.mubr.bf16.mxu0 0
    %274 = vmatmul.mubr.bf16.gmra.mxu0 %v198
    %v275 = vpop.f32.mrf.mxu0
    %v276 = vadd.f32 %v107, %v275
    %v277 = vpop.f32.mrf.mxu0
    %v278 = vpop.f32.mrf.mxu0
    %v279 = vadd.f32 %v112, %v278
    %v280 = vpop.f32.mrf.mxu0
    %281 = vmatprep.mubr.bf16.mxu0 0
    %282 = vmatmul.mubr.bf16.gmra.mxu0 %v201
    %v283 = vpop.f32.mrf.mxu0
    %v284 = vadd.f32 %v117, %v283
    %v285 = vpop.f32.mrf.mxu0
    %v286 = vpop.f32.mrf.mxu0
    %v287 = vadd.f32 %v122, %v286
    %v288 = vpop.f32.mrf.mxu0
    %289 = vmatprep.mubr.bf16.mxu0 0
    %290 = vmatmul.mubr.bf16.gmra.mxu0 %v204
    %v291 = vpop.f32.mrf.mxu0
    %v292 = vadd.f32 %v127, %v291
    %v293 = vpop.f32.mrf.mxu0
    %v294 = vpop.f32.mrf.mxu0
    %v295 = vadd.f32 %v132, %v294
    %v296 = vpop.f32.mrf.mxu0
    %297 = vmatprep.mubr.bf16.mxu0 0
    %298 = vmatmul.mubr.bf16.gmra.mxu0 %v207
    %v299 = vpop.f32.mrf.mxu0
    %v300 = vadd.f32 %v137, %v299
    %v301 = vpop.f32.mrf.mxu0
    %v302 = vpop.f32.mrf.mxu0
    %v303 = vadd.f32 %v142, %v302
    %v304 = vpop.f32.mrf.mxu0
    %305 = vdwg.mxu0
    %v306 = vtanh.pop %v244
    %v307 = vtanh.pop %v247
    %v308 = vtanh.pop %v252
    %v309 = vtanh.pop %v255
    %v310 = vtanh.pop %v260
    %v311 = vtanh.pop %v263
    %v312 = vtanh.pop %v268
    %v313 = vtanh.pop %v271
    %v314 = vtanh.pop %v276
    %v315 = vtanh.pop %v279
    %v316 = vtanh.pop %v284
    %v317 = vtanh.pop %v287
    %v318 = vtanh.pop %v292
    %v319 = vtanh.pop %v295
    %v320 = vtanh.pop %v300
    %v321 = vtanh.pop %v303
    %v322 = vld [vmem:[%s3] sm:$0xf]
    %v323 = vld [vmem:[%s3 + $0x4] sm:$0xf]
    %v324 = vld [vmem:[%s3 + $0x8] sm:$0xf]
    %v325 = vld [vmem:[%s3 + $0xc] sm:$0xf]
    %v326 = vld [vmem:[%s3 + $0x10] sm:$0xf]
    %v327 = vld [vmem:[%s3 + $0x14] sm:$0xf]
    %v328 = vld [vmem:[%s3 + $0x18] sm:$0xf]
    %v329 = vld [vmem:[%s3 + $0x1c] sm:$0xf]
    %v330 = vld [vmem:[%s3 + $0x20] sm:$0xf]
    %v331 = vld [vmem:[%s3 + $0x24] sm:$0xf]
    %v332 = vld [vmem:[%s3 + $0x28] sm:$0xf]
    %v333 = vld [vmem:[%s3 + $0x2c] sm:$0xf]
    %v334 = vld [vmem:[%s3 + $0x30] sm:$0xf]
    %v335 = vld [vmem:[%s3 + $0x34] sm:$0xf]
    %v336 = vld [vmem:[%s3 + $0x38] sm:$0xf]
    %v337 = vld [vmem:[%s3 + $0x3c] sm:$0xf]
    %v338 = vpack.c.bf16 %v307, %v306
    %v339 = vpack.c.bf16 %v309, %v308
    %v340 = vpack.c.bf16 %v311, %v310
    %v341 = vpack.c.bf16 %v313, %v312
    %v342 = vpack.c.bf16 %v315, %v314
    %v343 = vpack.c.bf16 %v317, %v316
    %v344 = vpack.c.bf16 %v319, %v318
    %v345 = vpack.c.bf16 %v321, %v320
    %v346 = vld [vmem:[%s4] sm:$0xff]
    %v347 = vld [vmem:[%s4 + $0x8] sm:$0xff]
    %v348 = vld [vmem:[%s4 + $0x10] sm:$0xff]
    %v349 = vld [vmem:[%s4 + $0x18] sm:$0xff]
    %v350 = vld [vmem:[%s4 + $0x20] sm:$0xff]
    %v351 = vld [vmem:[%s4 + $0x28] sm:$0xff]
    %v352 = vld [vmem:[%s4 + $0x30] sm:$0xff]
    %v353 = vld [vmem:[%s4 + $0x38] sm:$0xff]
    %v354 = vld [vmem:[%s4 + $0x40] sm:$0xff]
    %v355 = vld [vmem:[%s4 + $0x48] sm:$0xff]
    %v356 = vld [vmem:[%s4 + $0x50] sm:$0xff]
    %v357 = vld [vmem:[%s4 + $0x58] sm:$0xff]
    %v358 = vld [vmem:[%s4 + $0x60] sm:$0xff]
    %v359 = vld [vmem:[%s4 + $0x68] sm:$0xff]
    %v360 = vld [vmem:[%s4 + $0x70] sm:$0xff]
    %v361 = vld [vmem:[%s4 + $0x78] sm:$0xff]
    %363 = vset.pattern.permute.xlu0 0
    %364 = vperm.xlu0 %363, %v346
    %v365 = vpop.permute.xlu0 %364
    %368 = vset.pattern.permute.xlu0 0
    %369 = vperm.xlu0 %368, %v347
    %v370 = vpop.permute.xlu0 %369
    %373 = vset.pattern.permute.xlu0 0
    %374 = vperm.xlu0 %373, %v348
    %v375 = vpop.permute.xlu0 %374
    %378 = vset.pattern.permute.xlu0 0
    %379 = vperm.xlu0 %378, %v349
    %v380 = vpop.permute.xlu0 %379
    %383 = vset.pattern.permute.xlu0 0
    %384 = vperm.xlu0 %383, %v350
    %v385 = vpop.permute.xlu0 %384
    %388 = vset.pattern.permute.xlu0 0
    %389 = vperm.xlu0 %388, %v351
    %v390 = vpop.permute.xlu0 %389
    %393 = vset.pattern.permute.xlu0 0
    %394 = vperm.xlu0 %393, %v352
    %v395 = vpop.permute.xlu0 %394
    %398 = vset.pattern.permute.xlu0 0
    %399 = vperm.xlu0 %398, %v353
    %v400 = vpop.permute.xlu0 %399
    %403 = vset.pattern.permute.xlu0 0
    %404 = vperm.xlu0 %403, %v354
    %v405 = vpop.permute.xlu0 %404
    %408 = vset.pattern.permute.xlu0 0
    %409 = vperm.xlu0 %408, %v355
    %v410 = vpop.permute.xlu0 %409
    %413 = vset.pattern.permute.xlu0 0
    %414 = vperm.xlu0 %413, %v356
    %v415 = vpop.permute.xlu0 %414
    %418 = vset.pattern.permute.xlu0 0
    %419 = vperm.xlu0 %418, %v357
    %v420 = vpop.permute.xlu0 %419
    %423 = vset.pattern.permute.xlu0 0
    %424 = vperm.xlu0 %423, %v358
    %v425 = vpop.permute.xlu0 %424
    %428 = vset.pattern.permute.xlu0 0
    %429 = vperm.xlu0 %428, %v359
    %v430 = vpop.permute.xlu0 %429
    %433 = vset.pattern.permute.xlu0 0
    %434 = vperm.xlu0 %433, %v360
    %v435 = vpop.permute.xlu0 %434
    %438 = vset.pattern.permute.xlu0 0
    %439 = vperm.xlu0 %438, %v361
    %v440 = vpop.permute.xlu0 %439
    %v458 = vunpack.c.l.b16 %v322
    %v459 = vunpack.c.l.b16 %v323
    %v460 = vunpack.c.l.b16 %v324
    %v461 = vunpack.c.l.b16 %v325
    %v462 = vunpack.c.l.b16 %v326
    %v463 = vunpack.c.l.b16 %v327
    %v464 = vunpack.c.l.b16 %v328
    %v465 = vunpack.c.l.b16 %v329
    %v466 = vunpack.c.l.b16 %v330
    %v467 = vunpack.c.l.b16 %v331
    %v468 = vunpack.c.l.b16 %v332
    %v469 = vunpack.c.l.b16 %v333
    %v470 = vunpack.c.l.b16 %v334
    %v471 = vunpack.c.l.b16 %v335
    %v472 = vunpack.c.l.b16 %v336
    %v473 = vunpack.c.l.b16 %v337
    %v474 = vpack.c.b16 %v459, %v458
    %v475 = vpack.c.b16 %v461, %v460
    %v476 = vpack.c.b16 %v463, %v462
    %v477 = vpack.c.b16 %v465, %v464
    %v478 = vpack.c.b16 %v467, %v466
    %v479 = vpack.c.b16 %v469, %v468
    %v480 = vpack.c.b16 %v471, %v470
    %v481 = vpack.c.b16 %v473, %v472
    %490 = vmatprep.subr.bf16.mxu0 0
    %491 = vmatpush1.bf16.msra.mxu0 %v345
    %492 = vmatprep.subr.bf16.mxu0 0
    %493 = vmatpush1.bf16.msra.mxu0 %v344
    %494 = vmatprep.subr.bf16.mxu0 0
    %495 = vmatpush1.bf16.msra.mxu0 %v343
    %496 = vmatprep.subr.bf16.mxu0 0
    %497 = vmatpush1.bf16.msra.mxu0 %v342
    %498 = vmatprep.subr.bf16.mxu0 0
    %499 = vmatpush1.bf16.msra.mxu0 %v341
    %500 = vmatprep.subr.bf16.mxu0 0
    %501 = vmatpush1.bf16.msra.mxu0 %v340
    %502 = vmatprep.subr.bf16.mxu0 0
    %503 = vmatpush1.bf16.msra.mxu0 %v339
    %504 = vmatprep.subr.bf16.mxu0 0
    %505 = vmatpush1.bf16.msra.mxu0 %v338
    %506 = vmatprep.subr.bf16.mxu0 0
    %507 = vmatpush2.bf16.msra.mxu0 0
    %508 = vmatprep.subr.bf16.mxu0 0
    %509 = vmatpush2.bf16.msra.mxu0 0
    %510 = vmatprep.subr.bf16.mxu0 0
    %511 = vmatpush2.bf16.msra.mxu0 0
    %512 = vmatprep.subr.bf16.mxu0 0
    %513 = vmatpush2.bf16.msra.mxu0 0
    %514 = vmatprep.subr.bf16.mxu0 0
    %515 = vmatpush2.bf16.msra.mxu0 0
    %516 = vmatprep.subr.bf16.mxu0 0
    %517 = vmatpush2.bf16.msra.mxu0 0
    %518 = vmatprep.subr.bf16.mxu0 0
    %519 = vmatpush2.bf16.msra.mxu0 0
    %520 = vmatprep.subr.bf16.mxu0 0
    %521 = vmatpush2.bf16.msra.mxu0 0
    %522 = vmatprep.mubr.bf16.mxu0 0
    %523 = vmatmul.mubr.bf16.gmra.mxu0 %v474
    %v524 = vpop.f32.mrf.mxu0
    %v525 = vadd.f32 %v365, %v524
    %v526 = vpop.f32.mrf.mxu0
    %v527 = vpop.f32.mrf.mxu0
    %v528 = vadd.f32 %v370, %v527
    %v529 = vpop.f32.mrf.mxu0
    %530 = vmatprep.mubr.bf16.mxu0 0
    %531 = vmatmul.mubr.bf16.gmra.mxu0 %v475
    %v532 = vpop.f32.mrf.mxu0
    %v533 = vadd.f32 %v375, %v532
    %v534 = vpop.f32.mrf.mxu0
    %v535 = vpop.f32.mrf.mxu0
    %v536 = vadd.f32 %v380, %v535
    %v537 = vpop.f32.mrf.mxu0
    %538 = vmatprep.mubr.bf16.mxu0 0
    %539 = vmatmul.mubr.bf16.gmra.mxu0 %v476
    %v540 = vpop.f32.mrf.mxu0
    %v541 = vadd.f32 %v385, %v540
    %v542 = vpop.f32.mrf.mxu0
    %v543 = vpop.f32.mrf.mxu0
    %v544 = vadd.f32 %v390, %v543
    %v545 = vpop.f32.mrf.mxu0
    %546 = vmatprep.mubr.bf16.mxu0 0
    %547 = vmatmul.mubr.bf16.gmra.mxu0 %v477
    %v548 = vpop.f32.mrf.mxu0
    %v549 = vadd.f32 %v395, %v548
    %v550 = vpop.f32.mrf.mxu0
    %v551 = vpop.f32.mrf.mxu0
    %v552 = vadd.f32 %v400, %v551
    %v553 = vpop.f32.mrf.mxu0
    %554 = vmatprep.mubr.bf16.mxu0 0
    %555 = vmatmul.mubr.bf16.gmra.mxu0 %v478
    %v556 = vpop.f32.mrf.mxu0
    %v557 = vadd.f32 %v405, %v556
    %v558 = vpop.f32.mrf.mxu0
    %v559 = vpop.f32.mrf.mxu0
    %v560 = vadd.f32 %v410, %v559
    %v561 = vpop.f32.mrf.mxu0
    %562 = vmatprep.mubr.bf16.mxu0 0
    %563 = vmatmul.mubr.bf16.gmra.mxu0 %v479
    %v564 = vpop.f32.mrf.mxu0
    %v565 = vadd.f32 %v415, %v564
    %v566 = vpop.f32.mrf.mxu0
    %v567 = vpop.f32.mrf.mxu0
    %v568 = vadd.f32 %v420, %v567
    %v569 = vpop.f32.mrf.mxu0
    %570 = vmatprep.mubr.bf16.mxu0 0
    %571 = vmatmul.mubr.bf16.gmra.mxu0 %v480
    %v572 = vpop.f32.mrf.mxu0
    %v573 = vadd.f32 %v425, %v572
    %v574 = vpop.f32.mrf.mxu0
    %v575 = vpop.f32.mrf.mxu0
    %v576 = vadd.f32 %v430, %v575
    %v577 = vpop.f32.mrf.mxu0
    %578 = vmatprep.mubr.bf16.mxu0 0
    %579 = vmatmul.mubr.bf16.gmra.mxu0 %v481
    %v580 = vpop.f32.mrf.mxu0
    %v581 = vadd.f32 %v435, %v580
    %v582 = vpop.f32.mrf.mxu0
    %v583 = vpop.f32.mrf.mxu0
    %v584 = vadd.f32 %v440, %v583
    %v585 = vpop.f32.mrf.mxu0
    %586 = vdwg.mxu0
    %v587 = vtanh.pop %v525
    %v588 = vtanh.pop %v528
    %v589 = vtanh.pop %v533
    %v590 = vtanh.pop %v536
    %v591 = vtanh.pop %v541
    %v592 = vtanh.pop %v544
    %v593 = vtanh.pop %v549
    %v594 = vtanh.pop %v552
    %v595 = vtanh.pop %v557
    %v596 = vtanh.pop %v560
    %v597 = vtanh.pop %v565
    %v598 = vtanh.pop %v568
    %v599 = vtanh.pop %v573
    %v600 = vtanh.pop %v576
    %v601 = vtanh.pop %v581
    %v602 = vtanh.pop %v584
    %v603 = vld [vmem:[%s5] sm:$0xff]
    %v604 = vld [vmem:[%s5 + $0x8] sm:$0xff]
    %v605 = vld [vmem:[%s5 + $0x10] sm:$0xff]
    %v606 = vld [vmem:[%s5 + $0x18] sm:$0xff]
    %v607 = vld [vmem:[%s5 + $0x20] sm:$0xff]
    %v608 = vld [vmem:[%s5 + $0x28] sm:$0xff]
    %v609 = vld [vmem:[%s5 + $0x30] sm:$0xff]
    %v610 = vld [vmem:[%s5 + $0x38] sm:$0xff]
    %v611 = vld [vmem:[%s5 + $0x40] sm:$0xff]
    %v612 = vld [vmem:[%s5 + $0x48] sm:$0xff]
    %v613 = vld [vmem:[%s5 + $0x50] sm:$0xff]
    %v614 = vld [vmem:[%s5 + $0x58] sm:$0xff]
    %v615 = vld [vmem:[%s5 + $0x60] sm:$0xff]
    %v616 = vld [vmem:[%s5 + $0x68] sm:$0xff]
    %v617 = vld [vmem:[%s5 + $0x70] sm:$0xff]
    %v618 = vld [vmem:[%s5 + $0x78] sm:$0xff]
    %620 = vset.pattern.permute.xlu0 0
    %621 = vperm.xlu0 %620, %v603
    %v622 = vpop.permute.xlu0 %621
    %625 = vset.pattern.permute.xlu0 0
    %626 = vperm.xlu0 %625, %v604
    %v627 = vpop.permute.xlu0 %626
    %630 = vset.pattern.permute.xlu0 0
    %631 = vperm.xlu0 %630, %v605
    %v632 = vpop.permute.xlu0 %631
    %635 = vset.pattern.permute.xlu0 0
    %636 = vperm.xlu0 %635, %v606
    %v637 = vpop.permute.xlu0 %636
    %640 = vset.pattern.permute.xlu0 0
    %641 = vperm.xlu0 %640, %v607
    %v642 = vpop.permute.xlu0 %641
    %645 = vset.pattern.permute.xlu0 0
    %646 = vperm.xlu0 %645, %v608
    %v647 = vpop.permute.xlu0 %646
    %650 = vset.pattern.permute.xlu0 0
    %651 = vperm.xlu0 %650, %v609
    %v652 = vpop.permute.xlu0 %651
    %655 = vset.pattern.permute.xlu0 0
    %656 = vperm.xlu0 %655, %v610
    %v657 = vpop.permute.xlu0 %656
    %660 = vset.pattern.permute.xlu0 0
    %661 = vperm.xlu0 %660, %v611
    %v662 = vpop.permute.xlu0 %661
    %665 = vset.pattern.permute.xlu0 0
    %666 = vperm.xlu0 %665, %v612
    %v667 = vpop.permute.xlu0 %666
    %670 = vset.pattern.permute.xlu0 0
    %671 = vperm.xlu0 %670, %v613
    %v672 = vpop.permute.xlu0 %671
    %675 = vset.pattern.permute.xlu0 0
    %676 = vperm.xlu0 %675, %v614
    %v677 = vpop.permute.xlu0 %676
    %680 = vset.pattern.permute.xlu0 0
    %681 = vperm.xlu0 %680, %v615
    %v682 = vpop.permute.xlu0 %681
    %685 = vset.pattern.permute.xlu0 0
    %686 = vperm.xlu0 %685, %v616
    %v687 = vpop.permute.xlu0 %686
    %690 = vset.pattern.permute.xlu0 0
    %691 = vperm.xlu0 %690, %v617
    %v692 = vpop.permute.xlu0 %691
    %695 = vset.pattern.permute.xlu0 0
    %696 = vperm.xlu0 %695, %v618
    %v697 = vpop.permute.xlu0 %696
    %v699 = vmul.f32 %v587, %v622
    %v700 = vmul.f32 %v588, %v627
    %v701 = vmul.f32 %v589, %v632
    %v702 = vmul.f32 %v590, %v637
    %v703 = vmul.f32 %v591, %v642
    %v704 = vmul.f32 %v592, %v647
    %v705 = vmul.f32 %v593, %v652
    %v706 = vmul.f32 %v594, %v657
    %v707 = vmul.f32 %v595, %v662
    %v708 = vmul.f32 %v596, %v667
    %v709 = vmul.f32 %v597, %v672
    %v710 = vmul.f32 %v598, %v677
    %v711 = vmul.f32 %v599, %v682
    %v712 = vmul.f32 %v600, %v687
    %v713 = vmul.f32 %v601, %v692
    %v714 = vmul.f32 %v602, %v697
    %v715 = vadd.f32 %v699, %v700
    %v716 = vadd.f32 %v715, %v701
    %v717 = vadd.f32 %v716, %v702
    %v718 = vadd.f32 %v717, %v703
    %v719 = vadd.f32 %v718, %v704
    %v720 = vadd.f32 %v719, %v705
    %v721 = vadd.f32 %v720, %v706
    %v722 = vadd.f32 %v721, %v707
    %v723 = vadd.f32 %v722, %v708
    %v724 = vadd.f32 %v723, %v709
    %v725 = vadd.f32 %v724, %v710
    %v726 = vadd.f32 %v725, %v711
    %v727 = vadd.f32 %v726, %v712
    %v728 = vadd.f32 %v727, %v713
    %v729 = vadd.f32 %v728, %v714
    %v730 = vrot.slane %v729, 4
    %v731 = vadd.f32 %v729, %v730
    %v732 = vrot.slane %v731, 2
    %v733 = vadd.f32 %v731, %v732
    %v734 = vrot.slane %v733, 1
    %v735 = vadd.f32 %v733, %v734
    %s736 = sld [smem:[#allocation2]]
    %v737 = vstv %s736
    %v738 = vadd.f32 %v735, %v737
    %739 = vst [vmem:[#allocation3] sm:$0x1] %v738
    // Predicated region
    $region30: #{tpu_custom_call.1} parent=1 // pred_check
      _
    $region31: #{tpu_custom_call.1} parent=1 // pred_check_branch
      %741 = sbr.rel (0) target = $region33
    $region32: #{tpu_custom_call.1} parent=1 // pred_region
      %s743 = ssub.s32 16, 16
      %744 = vsyncadd [#allocation4], %s743
      %s746 = sshll.u32 [#allocation3], 4
      %s747 = int_to_ptr.vmem [resolvable:$true] %s746
      %749 = dma.vmem_to_hbm [thread:$0]  %s747, 16, %s7, [#allocation4]
    $region33: #{tpu_custom_call.1} parent=1 // pred_fallthru
      _
    // Predicated region
    $region34: #{tpu_custom_call.1} parent=1 // pred_check
      _
    $region35: #{tpu_custom_call.1} parent=1 // pred_check_branch
      %751 = sbr.rel (0) target = $region37
    $region36: #{tpu_custom_call.1} parent=1 // pred_region
      %752 = dma.done [#allocation4], 16
    $region37: #{tpu_custom_call.1} parent=1 // pred_fallthru
      _
    %753 = vsyncpa [#allocation4], 1

</llo_original>
